<compile_context>
chip_gen: v7x
topology: tpu7x:2x2x1
jax: 0.10.0
libtpu: 0.0.40
codegen_flags: <defaults>
</compile_context>

<pallas_src>
import jax
import jax.numpy as jnp
from jax.experimental import pallas as pl
from jax.experimental.pallas import tpu as pltpu  # noqa: F401  (TPU backend)


def _mlp_sampler_kernel(x_ref, w1_ref, b1_ref, w2_ref, b2_ref, eps_ref, out_ref):
    """Single invocation: all N = B*S rows at once.

    x_ref   : [N, I]   (x repeated per sample, row n = b*S + s)
    w1_ref  : [I, H]
    b1_ref  : [1, H]
    w2_ref  : [H+L, O]
    b2_ref  : [1, O]
    eps_ref : [N, L]
    out_ref : [N, O]
    """
    h_dim = w1_ref.shape[1]

    # Hidden layer: ReLU(x @ W1 + b1)  -> [N, H]
    h = jnp.dot(x_ref[...], w1_ref[...],
                preferred_element_type=jnp.float32) + b1_ref[...]
    h = jnp.maximum(h, 0.0)

    # Output layer: concat(h, eps) @ W2 + b2 == h @ W2[:H] + eps @ W2[H:] + b2
    w2 = w2_ref[...]
    hw = jnp.dot(h, w2[:h_dim, :], preferred_element_type=jnp.float32)
    ew = jnp.dot(eps_ref[...], w2[h_dim:, :], preferred_element_type=jnp.float32)
    out = jnp.maximum(hw + ew + b2_ref[...], 0.0)   # final ReLU (n_layers <= idx+1)

    out_ref[...] = out.astype(out_ref.dtype)


@jax.jit
def mlp_sampler_forward(x, w1, b1, w2, b2, eps):
    """x: [B, I]; w1: [I, H]; b1: [H]; w2: [H+L, O]; b2: [O]; eps: [B, S, L]."""
    B, _ = x.shape
    H = w1.shape[1]
    _, S, L = eps.shape
    O = w2.shape[1]
    N = B * S

    # Tiny prep ops: contiguous reshapes (free) + a [B, I] -> [B*S, I] repeat.
    x_rep = jnp.repeat(x, S, axis=0)            # row n = b*S + s
    eps_flat = eps.reshape(N, L)                # contiguous -> free
    b1_2d = b1.reshape(1, H)
    b2_2d = b2.reshape(1, O)

    out_flat = pl.pallas_call(
        _mlp_sampler_kernel,
        out_shape=jax.ShapeDtypeStruct((N, O), x.dtype),
        # No grid: the whole problem (< a few KiB) fits in VMEM with default
        # full-array blocks, so a single invocation avoids all per-step
        # pipeline overhead.  Well under v7x's 64 MiB VMEM budget.
    )(x_rep, w1, b1_2d, w2, b2_2d, eps_flat)

    return out_flat.reshape(B, S, O)            # contiguous -> free (PyTorch order)


def _reference_forward(x, w1, b1, w2, b2, eps):
    """Pure-JAX reference mirroring the PyTorch module."""
    h = jnp.maximum(x @ w1 + b1, 0.0)                       # [B, H]
    B, S, L = eps.shape
    h_exp = jnp.broadcast_to(h[:, None, :], (B, S, h.shape[-1]))
    z = jnp.concatenate([h_exp, eps], axis=-1)              # [B, S, H+L]
    return jnp.maximum(jnp.einsum("bsk,ko->bso", z, w2) + b2, 0.0)


if __name__ == "__main__":
    # Module hyper-parameters (defaults of MLPSampler).
    input_size, hidden_size, latent_dim, output_size = 1, 64, 16, 1
    batch, n_samples = 4, 8

    key = jax.random.PRNGKey(0)
    kx, k1, k2, k3, k4, keps = jax.random.split(key, 6)

    # Deterministic synthetic parameters (shapes match nn.Linear weights, transposed).
    x = jax.random.normal(kx, (batch, input_size), jnp.float32)
    w1 = jax.random.normal(k1, (input_size, hidden_size), jnp.float32) * (1.0 / input_size ** 0.5)
    b1 = jax.random.normal(k2, (hidden_size,), jnp.float32) * 0.1
    w2 = jax.random.normal(k3, (hidden_size + latent_dim, output_size), jnp.float32) \
        * (1.0 / (hidden_size + latent_dim) ** 0.5)
    b2 = jax.random.normal(k4, (output_size,), jnp.float32) * 0.1

    # EpsilonSampler noise (standard normal), generated once so kernel/ref match.
    eps = jax.random.normal(keps, (batch, n_samples, latent_dim), jnp.float32)

    out = mlp_sampler_forward(x, w1, b1, w2, b2, eps)
    out = jax.block_until_ready(out)

    ref = _reference_forward(x, w1, b1, w2, b2, eps)
    assert out.shape == (batch, n_samples, output_size)
    assert jnp.allclose(out, ref, atol=1e-5, rtol=1e-5)

    print("KERNEL_OK")
</pallas_src>

<mosaic_0001>
module attributes {stable_mosaic.version = 11 : i64} {
  func.func @_mlp_sampler_kernel(%arg0: memref<32x1xf32, #tpu.memory_space<vmem>>, %arg1: memref<1x64xf32, #tpu.memory_space<vmem>>, %arg2: memref<1x64xf32, #tpu.memory_space<vmem>>, %arg3: memref<80x1xf32, #tpu.memory_space<vmem>>, %arg4: memref<1x1xf32, #tpu.memory_space<vmem>>, %arg5: memref<32x16xf32, #tpu.memory_space<vmem>>, %arg6: memref<32x1xf32, #tpu.memory_space<vmem>>) attributes {dimension_semantics = [], scalar_prefetch = 0 : i64, scratch_operands = 0 : i64, tpu.core_type = #tpu.core_type<tc>} {
    %c0 = arith.constant 0 : index
    %c0_0 = arith.constant 0 : index
    %0 = vector.load %arg0[%c0, %c0_0] : memref<32x1xf32, #tpu.memory_space<vmem>>, vector<32x1xf32>
    %c0_1 = arith.constant 0 : index
    %c0_2 = arith.constant 0 : index
    %1 = vector.load %arg1[%c0_1, %c0_2] : memref<1x64xf32, #tpu.memory_space<vmem>>, vector<1x64xf32>
    %cst = arith.constant dense<0.000000e+00> : vector<32x64xf32>
    %2 = tpu.matmul %0, %1, %cst {dimension_numbers = #tpu.dot_dimension_numbers<[1], [0], [0], [1], [0, 0, 1, 1], [], []>} : vector<32x1xf32>, vector<1x64xf32>, vector<32x64xf32> -> vector<32x64xf32>
    %c0_3 = arith.constant 0 : index
    %c0_4 = arith.constant 0 : index
    %3 = vector.load %arg2[%c0_3, %c0_4] : memref<1x64xf32, #tpu.memory_space<vmem>>, vector<1x64xf32>
    %4 = vector.broadcast %3 : vector<1x64xf32> to vector<32x64xf32>
    %5 = arith.addf %2, %4 : vector<32x64xf32>
    %cst_5 = arith.constant 0.000000e+00 : f32
    %6 = vector.broadcast %cst_5 : f32 to vector<32x64xf32>
    %7 = arith.maximumf %5, %6 : vector<32x64xf32>
    %c0_6 = arith.constant 0 : index
    %c0_7 = arith.constant 0 : index
    %8 = vector.load %arg3[%c0_6, %c0_7] : memref<80x1xf32, #tpu.memory_space<vmem>>, vector<80x1xf32>
    %9 = vector.extract_strided_slice %8 {offsets = [0, 0], sizes = [64, 1], strides = [1, 1]} : vector<80x1xf32> to vector<64x1xf32>
    %cst_8 = arith.constant dense<0.000000e+00> : vector<32x1xf32>
    %10 = tpu.matmul %7, %9, %cst_8 {dimension_numbers = #tpu.dot_dimension_numbers<[1], [0], [0], [1], [0, 0, 1, 1], [], []>} : vector<32x64xf32>, vector<64x1xf32>, vector<32x1xf32> -> vector<32x1xf32>
    %c0_9 = arith.constant 0 : index
    %c0_10 = arith.constant 0 : index
    %11 = vector.load %arg5[%c0_9, %c0_10] : memref<32x16xf32, #tpu.memory_space<vmem>>, vector<32x16xf32>
    %12 = vector.extract_strided_slice %8 {offsets = [64, 0], sizes = [16, 1], strides = [1, 1]} : vector<80x1xf32> to vector<16x1xf32>
    %cst_11 = arith.constant dense<0.000000e+00> : vector<32x1xf32>
    %13 = tpu.matmul %11, %12, %cst_11 {dimension_numbers = #tpu.dot_dimension_numbers<[1], [0], [0], [1], [0, 0, 1, 1], [], []>} : vector<32x16xf32>, vector<16x1xf32>, vector<32x1xf32> -> vector<32x1xf32>
    %14 = arith.addf %10, %13 : vector<32x1xf32>
    %c0_12 = arith.constant 0 : index
    %c0_13 = arith.constant 0 : index
    %15 = vector.load %arg4[%c0_12, %c0_13] : memref<1x1xf32, #tpu.memory_space<vmem>>, vector<1x1xf32>
    %16 = vector.broadcast %15 : vector<1x1xf32> to vector<32x1xf32>
    %17 = arith.addf %14, %16 : vector<32x1xf32>
    %cst_14 = arith.constant 0.000000e+00 : f32
    %18 = vector.broadcast %cst_14 : f32 to vector<32x1xf32>
    %19 = arith.maximumf %17, %18 : vector<32x1xf32>
    %c0_15 = arith.constant 0 : index
    %c0_16 = arith.constant 0 : index
    %20 = vector.load %arg6[%c0_15, %c0_16] : memref<32x1xf32, #tpu.memory_space<vmem>>, vector<32x1xf32>
    tpu.vector_store %arg6[%c0_15, %c0_16], %19 {strides = array<i32>} : memref<32x1xf32, #tpu.memory_space<vmem>>, vector<32x1xf32>,
    return
  }
}

</mosaic_0001>

<llo_original>
// kernel: mlp_sampler_forward.1
$region0: #{mlp_sampler_forward.1}
  #allocation0 [shape = 'u32[]', space=smem, size = 0x4, offset = 0x4, fixed_abs, tag = 'smem constant byte address 0x4 - core index']
  #allocation1 [shape = 'u32[144,128]{1,0:T(1,128)}', space=vmem, size = 0x12000, scoped, tag = 'internal scratch']
  #allocation2 [shape = 'f32[1,1]{1,0:T(1,128)S(1)}', space=vmem, size = 0x200, scoped, tag = 'scoped memory for mlp_sampler_forward.1']
  %s0 = inlined_call_operand.vmem [shape: f32[32,1], index: 0, kind: input, shape index: {}]
  %s1 = inlined_call_operand.vmem [shape: f32[1,64], index: 1, kind: input, shape index: {}]
  %s2 = inlined_call_operand.vmem [shape: f32[1,64], index: 2, kind: input, shape index: {}]
  %s3 = inlined_call_operand.vmem [shape: f32[80,1], index: 3, kind: input, shape index: {}]
  %s4 = inlined_call_operand.<no memory space> [shape: f32[1,1], index: 4, kind: input, shape index: {}]
  %s5 = inlined_call_operand.vmem [shape: f32[32,16], index: 5, kind: input, shape index: {}]
  %s6 = inlined_call_operand.vmem [shape: f32[32,1], index: 6, kind: output, shape index: {}]
  %s7 = sld [smem:[#allocation0]]
  $region34: #{mlp_sampler_forward.1} parent=0
    _
  %s9 = ssub.s32 1, %s7
  %s10 = scalar_select 0, %s9, %s7
  %v11 = vstv %s4
  %12 = vst [vmem:[#allocation2] sm:$0x1] %v11
  // Predicated region
  $region2: #{mlp_sampler_forward.1} parent=0 // pred_check
    _
  $region3: #{mlp_sampler_forward.1} parent=0 // pred_check_branch
    %14 = sbr.rel (0) target = $region5
  $region4: #{mlp_sampler_forward.1} parent=0 // pred_region
    _
  $region5: #{mlp_sampler_forward.1} parent=0 // pred_fallthru
    _
  // Predicated region
  $region6: #{mlp_sampler_forward.1} parent=0 // pred_check
    _
  $region7: #{mlp_sampler_forward.1} parent=0 // pred_check_branch
    %16 = sbr.rel (0) target = $region9
  $region8: #{mlp_sampler_forward.1} parent=0 // pred_region
    _
  $region9: #{mlp_sampler_forward.1} parent=0 // pred_fallthru
    _
  // Predicated region
  $region10: #{mlp_sampler_forward.1} parent=0 // pred_check
    _
  $region11: #{mlp_sampler_forward.1} parent=0 // pred_check_branch
    %18 = sbr.rel (0) target = $region13
  $region12: #{mlp_sampler_forward.1} parent=0 // pred_region
    _
  $region13: #{mlp_sampler_forward.1} parent=0 // pred_fallthru
    _
  // Predicated region
  $region14: #{mlp_sampler_forward.1} parent=0 // pred_check
    _
  $region15: #{mlp_sampler_forward.1} parent=0 // pred_check_branch
    %20 = sbr.rel (0) target = $region17
  $region16: #{mlp_sampler_forward.1} parent=0 // pred_region
    _
  $region17: #{mlp_sampler_forward.1} parent=0 // pred_fallthru
    _
  // Predicated region
  $region18: #{mlp_sampler_forward.1} parent=0 // pred_check
    _
  $region19: #{mlp_sampler_forward.1} parent=0 // pred_check_branch
    %22 = sbr.rel (0) target = $region21
  $region20: #{mlp_sampler_forward.1} parent=0 // pred_region
    _
  $region21: #{mlp_sampler_forward.1} parent=0 // pred_fallthru
    _
  // Predicated region
  $region22: #{mlp_sampler_forward.1} parent=0 // pred_check
    _
  $region23: #{mlp_sampler_forward.1} parent=0 // pred_check_branch
    %24 = sbr.rel (0) target = $region25
  $region24: #{mlp_sampler_forward.1} parent=0 // pred_region
    _
  $region25: #{mlp_sampler_forward.1} parent=0 // pred_fallthru
    _
  %v25 = vld [vmem:[%s0] sm:$0xff]
  %v26 = vld [vmem:[%s0 + $0x8] sm:$0xff]
  %v27 = vld [vmem:[%s0 + $0x10] sm:$0xff]
  %v28 = vld [vmem:[%s0 + $0x18] sm:$0xff]
  %v29 = vld [vmem:[%s1] sm:$0x1]
  %v30 = vld [vmem:[%s2] sm:$0x1]
  %v32 = vlaneseq
  %v33 = vshrl.u32 %v32, 7
  %v34 = vsub.s32 0, %v33
  %v35 = vrot.slane %v30, %v34
  %vm37 = vcmask 7168
  %v39 = vsel %vm37, %v25, 0
  %v42 = vsel %vm37, %v26, 0
  %v45 = vsel %vm37, %v27, 0
  %v48 = vsel %vm37, %v28, 0
  %vm50 = vcmask 1040384
  %v52 = vsel %vm50, %v29, 0
  %54 = vmatprep.subr.mxu0 0.0
  %55 = vmatpush1.msra.mxu0 %v52
  %56 = vmatprep.subr.mxu0 0.0
  %57 = vmatpush1.msra.mxu0 0.0
  %58 = vmatprep.subr.mxu0 0.0
  %59 = vmatpush1.msra.mxu0 0.0
  %60 = vmatprep.subr.mxu0 0.0
  %61 = vmatpush1.msra.mxu0 0.0
  %62 = vmatprep.subr.mxu0 0.0
  %63 = vmatpush1.msra.mxu0 0.0
  %64 = vmatprep.subr.mxu0 0.0
  %65 = vmatpush1.msra.mxu0 0.0
  %66 = vmatprep.subr.mxu0 0.0
  %67 = vmatpush1.msra.mxu0 0.0
  %68 = vmatprep.subr.mxu0 0.0
  %69 = vmatpush1.msra.mxu0 0.0
  %70 = vmatprep.subr.mxu0 0.0
  %71 = vmatpush1.msra.mxu0 0.0
  %72 = vmatprep.subr.mxu0 0.0
  %73 = vmatpush1.msra.mxu0 0.0
  %74 = vmatprep.subr.mxu0 0.0
  %75 = vmatpush1.msra.mxu0 0.0
  %76 = vmatprep.subr.mxu0 0.0
  %77 = vmatpush1.msra.mxu0 0.0
  %78 = vmatprep.subr.mxu0 0.0
  %79 = vmatpush1.msra.mxu0 0.0
  %80 = vmatprep.subr.mxu0 0.0
  %81 = vmatpush1.msra.mxu0 0.0
  %82 = vmatprep.subr.mxu0 0.0
  %83 = vmatpush1.msra.mxu0 0.0
  %84 = vmatprep.subr.mxu0 0.0
  %85 = vmatpush1.msra.mxu0 0.0
  %86 = vmatprep.subr.mxu0 0.0
  %87 = vmatpush1.msra.mxu0 0.0
  %88 = vmatprep.subr.mxu0 0.0
  %89 = vmatpush1.msra.mxu0 0.0
  %90 = vmatprep.subr.mxu0 0.0
  %91 = vmatpush1.msra.mxu0 0.0
  %92 = vmatprep.subr.mxu0 0.0
  %93 = vmatpush1.msra.mxu0 0.0
  %94 = vmatprep.subr.mxu0 0.0
  %95 = vmatpush1.msra.mxu0 0.0
  %96 = vmatprep.subr.mxu0 0.0
  %97 = vmatpush1.msra.mxu0 0.0
  %98 = vmatprep.subr.mxu0 0.0
  %99 = vmatpush1.msra.mxu0 0.0
  %100 = vmatprep.subr.mxu0 0.0
  %101 = vmatpush1.msra.mxu0 0.0
  %102 = vmatprep.subr.mxu0 0.0
  %103 = vmatpush1.msra.mxu0 0.0
  %104 = vmatprep.subr.mxu0 0.0
  %105 = vmatpush1.msra.mxu0 0.0
  %106 = vmatprep.subr.mxu0 0.0
  %107 = vmatpush1.msra.mxu0 0.0
  %108 = vmatprep.subr.mxu0 0.0
  %109 = vmatpush1.msra.mxu0 0.0
  %110 = vmatprep.subr.mxu0 0.0
  %111 = vmatpush1.msra.mxu0 0.0
  %112 = vmatprep.subr.mxu0 0.0
  %113 = vmatpush1.msra.mxu0 0.0
  %114 = vmatprep.subr.mxu0 0.0
  %115 = vmatpush1.msra.mxu0 0.0
  %116 = vmatprep.subr.mxu0 0.0
  %117 = vmatpush1.msra.mxu0 0.0
  %118 = vmatprep.mubr.f32.mxu0 0.0
  %119 = vmatmul.mubr.f32.gmra.mrb[0].mxu0 %v39
  %v120 = vpop.f32.mrb[0].mxu0
  %v121 = vadd.f32 %v35, %v120
  %v122 = vpop.f32.mrb[0].mxu0
  %123 = vmatprep.mubr.f32.mxu0 0.0
  %124 = vmatmul.mubr.f32.gmra.mrb[0].mxu0 %v42
  %v125 = vpop.f32.mrb[0].mxu0
  %v126 = vadd.f32 %v35, %v125
  %v127 = vpop.f32.mrb[0].mxu0
  %128 = vmatprep.mubr.f32.mxu0 0.0
  %129 = vmatmul.mubr.f32.gmra.mrb[0].mxu0 %v45
  %v130 = vpop.f32.mrb[0].mxu0
  %v131 = vadd.f32 %v35, %v130
  %v132 = vpop.f32.mrb[0].mxu0
  %133 = vmatprep.mubr.f32.mxu0 0.0
  %134 = vmatmul.mubr.f32.gmra.mrb[0].mxu0 %v48
  %v135 = vpop.f32.mrb[0].mxu0
  %v136 = vadd.f32 %v35, %v135
  %v137 = vpop.f32.mrb[0].mxu0
  %138 = vdwg.mxu0
  %v139 = vmax.f32 %v121, 0.0
  %v140 = vmax.f32 %v126, 0.0
  %v141 = vmax.f32 %v131, 0.0
  %v142 = vmax.f32 %v136, 0.0
  %v143 = vld [vmem:[%s3] sm:$0xff]
  %v144 = vld [vmem:[%s3 + $0x8] sm:$0xff]
  %v145 = vld [vmem:[%s3 + $0x10] sm:$0xff]
  %v146 = vld [vmem:[%s3 + $0x18] sm:$0xff]
  %v147 = vld [vmem:[%s3 + $0x20] sm:$0xff]
  %v148 = vld [vmem:[%s3 + $0x28] sm:$0xff]
  %v149 = vld [vmem:[%s3 + $0x30] sm:$0xff]
  %v150 = vld [vmem:[%s3 + $0x38] sm:$0xff]
  %v151 = vld [vmem:[%s3 + $0x40] sm:$0xff]
  %v152 = vld [vmem:[%s3 + $0x48] sm:$0xff]
  %v153 = vld [vmem:[%s5] sm:$0xff]
  %v154 = vld [vmem:[%s5 + $0x8] sm:$0xff]
  %v155 = vld [vmem:[%s5 + $0x10] sm:$0xff]
  %v156 = vld [vmem:[%s5 + $0x18] sm:$0xff]
  %vm157 = vcmask 130048
  %v159 = vsel %vm157, %v153, 0
  %v162 = vsel %vm157, %v154, 0
  %v165 = vsel %vm157, %v155, 0
  %v168 = vsel %vm157, %v156, 0
  %170 = vmatprep.subr.mxu0 0.0
  %171 = vmatpush1.msra.mxu0 %v151
  %172 = vmatprep.subr.mxu0 0.0
  %173 = vmatpush1.msra.mxu0 %v152
  %174 = vmatprep.subr.mxu0 0.0
  %175 = vmatpush1.msra.mxu0 0.0
  %176 = vmatprep.subr.mxu0 0.0
  %177 = vmatpush1.msra.mxu0 0.0
  %178 = vmatprep.subr.mxu0 0.0
  %179 = vmatpush1.msra.mxu0 0.0
  %180 = vmatprep.subr.mxu0 0.0
  %181 = vmatpush1.msra.mxu0 0.0
  %182 = vmatprep.subr.mxu0 0.0
  %183 = vmatpush1.msra.mxu0 0.0
  %184 = vmatprep.subr.mxu0 0.0
  %185 = vmatpush1.msra.mxu0 0.0
  %186 = vmatprep.subr.mxu0 0.0
  %187 = vmatpush1.msra.mxu0 0.0
  %188 = vmatprep.subr.mxu0 0.0
  %189 = vmatpush1.msra.mxu0 0.0
  %190 = vmatprep.subr.mxu0 0.0
  %191 = vmatpush1.msra.mxu0 0.0
  %192 = vmatprep.subr.mxu0 0.0
  %193 = vmatpush1.msra.mxu0 0.0
  %194 = vmatprep.subr.mxu0 0.0
  %195 = vmatpush1.msra.mxu0 0.0
  %196 = vmatprep.subr.mxu0 0.0
  %197 = vmatpush1.msra.mxu0 0.0
  %198 = vmatprep.subr.mxu0 0.0
  %199 = vmatpush1.msra.mxu0 0.0
  %200 = vmatprep.subr.mxu0 0.0
  %201 = vmatpush1.msra.mxu0 0.0
  %202 = vmatprep.subr.mxu0 0.0
  %203 = vmatpush1.msra.mxu0 0.0
  %204 = vmatprep.subr.mxu0 0.0
  %205 = vmatpush1.msra.mxu0 0.0
  %206 = vmatprep.subr.mxu0 0.0
  %207 = vmatpush1.msra.mxu0 0.0
  %208 = vmatprep.subr.mxu0 0.0
  %209 = vmatpush1.msra.mxu0 0.0
  %210 = vmatprep.subr.mxu0 0.0
  %211 = vmatpush1.msra.mxu0 0.0
  %212 = vmatprep.subr.mxu0 0.0
  %213 = vmatpush1.msra.mxu0 0.0
  %214 = vmatprep.subr.mxu0 0.0
  %215 = vmatpush1.msra.mxu0 0.0
  %216 = vmatprep.subr.mxu0 0.0
  %217 = vmatpush1.msra.mxu0 0.0
  %218 = vmatprep.subr.mxu0 0.0
  %219 = vmatpush1.msra.mxu0 0.0
  %220 = vmatprep.subr.mxu0 0.0
  %221 = vmatpush1.msra.mxu0 0.0
  %222 = vmatprep.subr.mxu0 0.0
  %223 = vmatpush1.msra.mxu0 0.0
  %224 = vmatprep.subr.mxu0 0.0
  %225 = vmatpush1.msra.mxu0 0.0
  %226 = vmatprep.subr.mxu0 0.0
  %227 = vmatpush1.msra.mxu0 0.0
  %228 = vmatprep.subr.mxu0 0.0
  %229 = vmatpush1.msra.mxu0 0.0
  %230 = vmatprep.subr.mxu0 0.0
  %231 = vmatpush1.msra.mxu0 0.0
  %232 = vmatprep.subr.mxu0 0.0
  %233 = vmatpush1.msra.mxu0 0.0
  %234 = vmatprep.mubr.f32.mxu0 0.0
  %235 = vmatmul.mubr.f32.gmra.mrb[0].mxu0 %v159
  %v236 = vpop.f32.mrb[0].mxu0
  %v237 = vadd.f32 0.0, %v236
  %v238 = vpop.f32.mrb[0].mxu0
  %239 = vmatprep.mubr.f32.mxu0 0.0
  %240 = vmatmul.mubr.f32.gmra.mrb[0].mxu0 %v162
  %v241 = vpop.f32.mrb[0].mxu0
  %v242 = vadd.f32 0.0, %v241
  %v243 = vpop.f32.mrb[0].mxu0
  %244 = vmatprep.mubr.f32.mxu0 0.0
  %245 = vmatmul.mubr.f32.gmra.mrb[0].mxu0 %v165
  %v246 = vpop.f32.mrb[0].mxu0
  %v247 = vadd.f32 0.0, %v246
  %v248 = vpop.f32.mrb[0].mxu0
  %249 = vmatprep.mubr.f32.mxu0 0.0
  %250 = vmatmul.mubr.f32.gmra.mrb[0].mxu0 %v168
  %v251 = vpop.f32.mrb[0].mxu0
  %v252 = vadd.f32 0.0, %v251
  %v253 = vpop.f32.mrb[0].mxu0
  %254 = vdwg.mxu0
  %vm255 = vcmask 523264
  %v257 = vsel %vm255, %v139, 0
  %v260 = vsel %vm255, %v140, 0
  %v263 = vsel %vm255, %v141, 0
  %v266 = vsel %vm255, %v142, 0
  %268 = vmatprep.subr.mxu0 0.0
  %269 = vmatpush1.msra.mxu0 %v143
  %270 = vmatprep.subr.mxu0 0.0
  %271 = vmatpush1.msra.mxu0 %v144
  %272 = vmatprep.subr.mxu0 0.0
  %273 = vmatpush1.msra.mxu0 %v145
  %274 = vmatprep.subr.mxu0 0.0
  %275 = vmatpush1.msra.mxu0 %v146
  %276 = vmatprep.subr.mxu0 0.0
  %277 = vmatpush1.msra.mxu0 %v147
  %278 = vmatprep.subr.mxu0 0.0
  %279 = vmatpush1.msra.mxu0 %v148
  %280 = vmatprep.subr.mxu0 0.0
  %281 = vmatpush1.msra.mxu0 %v149
  %282 = vmatprep.subr.mxu0 0.0
  %283 = vmatpush1.msra.mxu0 %v150
  %284 = vmatprep.subr.mxu0 0.0
  %285 = vmatpush1.msra.mxu0 0.0
  %286 = vmatprep.subr.mxu0 0.0
  %287 = vmatpush1.msra.mxu0 0.0
  %288 = vmatprep.subr.mxu0 0.0
  %289 = vmatpush1.msra.mxu0 0.0
  %290 = vmatprep.subr.mxu0 0.0
  %291 = vmatpush1.msra.mxu0 0.0
  %292 = vmatprep.subr.mxu0 0.0
  %293 = vmatpush1.msra.mxu0 0.0
  %294 = vmatprep.subr.mxu0 0.0
  %295 = vmatpush1.msra.mxu0 0.0
  %296 = vmatprep.subr.mxu0 0.0
  %297 = vmatpush1.msra.mxu0 0.0
  %298 = vmatprep.subr.mxu0 0.0
  %299 = vmatpush1.msra.mxu0 0.0
  %300 = vmatprep.subr.mxu0 0.0
  %301 = vmatpush1.msra.mxu0 0.0
  %302 = vmatprep.subr.mxu0 0.0
  %303 = vmatpush1.msra.mxu0 0.0
  %304 = vmatprep.subr.mxu0 0.0
  %305 = vmatpush1.msra.mxu0 0.0
  %306 = vmatprep.subr.mxu0 0.0
  %307 = vmatpush1.msra.mxu0 0.0
  %308 = vmatprep.subr.mxu0 0.0
  %309 = vmatpush1.msra.mxu0 0.0
  %310 = vmatprep.subr.mxu0 0.0
  %311 = vmatpush1.msra.mxu0 0.0
  %312 = vmatprep.subr.mxu0 0.0
  %313 = vmatpush1.msra.mxu0 0.0
  %314 = vmatprep.subr.mxu0 0.0
  %315 = vmatpush1.msra.mxu0 0.0
  %316 = vmatprep.subr.mxu0 0.0
  %317 = vmatpush1.msra.mxu0 0.0
  %318 = vmatprep.subr.mxu0 0.0
  %319 = vmatpush1.msra.mxu0 0.0
  %320 = vmatprep.subr.mxu0 0.0
  %321 = vmatpush1.msra.mxu0 0.0
  %322 = vmatprep.subr.mxu0 0.0
  %323 = vmatpush1.msra.mxu0 0.0
  %324 = vmatprep.subr.mxu0 0.0
  %325 = vmatpush1.msra.mxu0 0.0
  %326 = vmatprep.subr.mxu0 0.0
  %327 = vmatpush1.msra.mxu0 0.0
  %328 = vmatprep.subr.mxu0 0.0
  %329 = vmatpush1.msra.mxu0 0.0
  %330 = vmatprep.subr.mxu0 0.0
  %331 = vmatpush1.msra.mxu0 0.0
  %332 = vmatprep.mubr.f32.mxu0 0.0
  %333 = vmatmul.mubr.f32.gmra.mrb[0].mxu0 %v257
  %v334 = vpop.f32.mrb[0].mxu0
  %v335 = vadd.f32 %v237, %v334
  %v336 = vpop.f32.mrb[0].mxu0
  %337 = vmatprep.mubr.f32.mxu0 0.0
  %338 = vmatmul.mubr.f32.gmra.mrb[0].mxu0 %v260
  %v339 = vpop.f32.mrb[0].mxu0
  %v340 = vadd.f32 %v242, %v339
  %v341 = vpop.f32.mrb[0].mxu0
  %342 = vmatprep.mubr.f32.mxu0 0.0
  %343 = vmatmul.mubr.f32.gmra.mrb[0].mxu0 %v263
  %v344 = vpop.f32.mrb[0].mxu0
  %v345 = vadd.f32 %v247, %v344
  %v346 = vpop.f32.mrb[0].mxu0
  %347 = vmatprep.mubr.f32.mxu0 0.0
  %348 = vmatmul.mubr.f32.gmra.mrb[0].mxu0 %v266
  %v349 = vpop.f32.mrb[0].mxu0
  %v350 = vadd.f32 %v252, %v349
  %v351 = vpop.f32.mrb[0].mxu0
  %352 = vdwg.mxu0
  %v353 = vld [vmem:[#allocation2] sm:$0x1]
  %v355 = vlaneseq
  %v356 = vshrl.u32 %v355, 7
  %v357 = vsub.s32 0, %v356
  %v358 = vrot.slane %v353, %v357
  %v360 = vadd.f32 %v335, %v358
  %v361 = vadd.f32 %v340, %v358
  %v362 = vadd.f32 %v345, %v358
  %v363 = vadd.f32 %v350, %v358
  %v364 = vmax.f32 %v360, 0.0
  %v365 = vmax.f32 %v361, 0.0
  %v366 = vmax.f32 %v362, 0.0
  %v367 = vmax.f32 %v363, 0.0
  %368 = vst.msk [vmem:[%s6] sm:$0xff] %vm37, %v364
  %369 = vst.msk [vmem:[%s6 + $0x8] sm:$0xff] %vm37, %v365
  %370 = vst.msk [vmem:[%s6 + $0x10] sm:$0xff] %vm37, %v366
  %371 = vst.msk [vmem:[%s6 + $0x18] sm:$0xff] %vm37, %v367
  // Predicated region
  $region26: #{mlp_sampler_forward.1} parent=0 // pred_check
    _
  $region27: #{mlp_sampler_forward.1} parent=0 // pred_check_branch
    %373 = sbr.rel (0) target = $region29
  $region28: #{mlp_sampler_forward.1} parent=0 // pred_region
    _
  $region29: #{mlp_sampler_forward.1} parent=0 // pred_fallthru
    _
  // Predicated region
  $region30: #{mlp_sampler_forward.1} parent=0 // pred_check
    _
  $region31: #{mlp_sampler_forward.1} parent=0 // pred_check_branch
    %375 = sbr.rel (0) target = $region33
  $region32: #{mlp_sampler_forward.1} parent=0 // pred_region
    _
  $region33: #{mlp_sampler_forward.1} parent=0 // pred_fallthru
    _

</llo_original>
